<compile_context>
chip_gen: v6e
topology: v6e:2x2x1
jax: 0.10.0
libtpu: 0.0.40
codegen_flags: <defaults>
</compile_context>

<pallas_src>
import functools

import jax
import jax.numpy as jnp
from jax.experimental import pallas as pl
from jax.experimental.pallas import tpu as pltpu

_LANES = 128                 # vreg lane width: last block dim exactly lane-dense
_DEFAULT_BLOCK_ROWS = 8192   # (8192, 128) f32 tile = 4 MiB; in+out double-buffered = 16 MiB VMEM


def _hswish_kernel(x_ref, o_ref):
    x = x_ref[...]
    # hardswish: x * relu6(x + 3) / 6 == x * clamp(x + 3, 0, 6) * (1/6)
    r6 = jnp.minimum(jnp.maximum(x + 3.0, 0.0), 6.0)
    o_ref[...] = (x * r6 * (1.0 / 6.0)).astype(o_ref.dtype)


@functools.partial(jax.jit, static_argnames=("block_rows",))
def hswish(x, *, block_rows=_DEFAULT_BLOCK_ROWS):
    """Hardswish forward matching mmyolo Hswish.forward; works on any input shape."""
    orig_shape = x.shape
    orig_dtype = x.dtype
    total = x.size

    # Flatten to a (rows, 128) lane-dense 2-D view. For contiguous inputs this
    # reshape is free (no data movement); padding happens only for odd sizes.
    flat = x.reshape(-1)
    lane_pad = (-total) % _LANES
    if lane_pad:
        flat = jnp.pad(flat, (0, lane_pad))
    rows = flat.size // _LANES

    # Row-block size: multiple of 8 (sublane tiling), capped at block_rows.
    # When the cap is not hit, the (single) block equals the full padded array,
    # which satisfies the (8, 128) block-shape rule for any dtype.
    br = min(block_rows, ((rows + 7) // 8) * 8)
    row_pad = (-rows) % br
    if row_pad:
        flat = jnp.pad(flat, (0, row_pad * _LANES))
        rows += row_pad

    x2 = flat.reshape(rows, _LANES)
    grid = (rows // br,)

    out2 = pl.pallas_call(
        _hswish_kernel,
        out_shape=jax.ShapeDtypeStruct((rows, _LANES), orig_dtype),
        grid=grid,
        in_specs=[pl.BlockSpec((br, _LANES), lambda i: (i, 0))],
        out_specs=pl.BlockSpec((br, _LANES), lambda i: (i, 0)),
        compiler_params=pltpu.CompilerParams(
            # Row blocks are independent -> lets v7x's 2 TCs split the grid.
            dimension_semantics=("parallel",),
        ),
    )(x2)

    return out2.reshape(-1)[:total].reshape(orig_shape)


def _reference(x):
    # Pure-JAX reference: x * relu6(x + 3) / 6
    return x * jnp.clip(x + 3.0, 0.0, 6.0) / 6.0


if __name__ == "__main__":
    key = jax.random.PRNGKey(0)
    k1, k2 = jax.random.split(key)

    # Main case: NCHW activation tensor as the module would see it.
    x = jax.random.normal(k1, (2, 4, 16, 16), dtype=jnp.float32) * 4.0
    out = jax.block_until_ready(hswish(x))
    ref = _reference(x)
    assert out.shape == x.shape and out.dtype == x.dtype
    assert jnp.allclose(out, ref, atol=1e-5, rtol=1e-5), \
        f"max err {jnp.max(jnp.abs(out - ref))}"

    # Odd-sized case exercising the lane/row padding path.
    x2 = jax.random.normal(k2, (3, 5, 7, 9), dtype=jnp.float32) * 4.0
    out2 = jax.block_until_ready(hswish(x2))
    ref2 = _reference(x2)
    assert out2.shape == x2.shape
    assert jnp.allclose(out2, ref2, atol=1e-5, rtol=1e-5), \
        f"max err {jnp.max(jnp.abs(out2 - ref2))}"

    print("KERNEL_OK")
</pallas_src>

<mosaic_0001>
module attributes {stable_mosaic.version = 11 : i64} {
  func.func @_hswish_kernel(%arg0: i32, %arg1: memref<16x128xf32, #tpu.memory_space<vmem>>, %arg2: memref<16x128xf32, #tpu.memory_space<vmem>>) attributes {dimension_semantics = [#tpu.dimension_semantics<parallel>], iteration_bounds = array<i64: 1>, scalar_prefetch = 0 : i64, scratch_operands = 0 : i64, tpu.core_type = #tpu.core_type<tc>, window_params = [{transform_indices = @transform_0, window_bounds = array<i64: 16, 128>}, {transform_indices = @transform_1, window_bounds = array<i64: 16, 128>}]} {
    %c0 = arith.constant 0 : index
    %c0_0 = arith.constant 0 : index
    %0 = vector.load %arg1[%c0, %c0_0] : memref<16x128xf32, #tpu.memory_space<vmem>>, vector<16x128xf32>
    %cst = arith.constant 3.000000e+00 : f32
    %1 = vector.broadcast %cst : f32 to vector<16x128xf32>
    %2 = arith.addf %0, %1 : vector<16x128xf32>
    %cst_1 = arith.constant 0.000000e+00 : f32
    %3 = vector.broadcast %cst_1 : f32 to vector<16x128xf32>
    %4 = arith.maximumf %2, %3 : vector<16x128xf32>
    %cst_2 = arith.constant 6.000000e+00 : f32
    %5 = vector.broadcast %cst_2 : f32 to vector<16x128xf32>
    %6 = arith.minimumf %4, %5 : vector<16x128xf32>
    %7 = arith.mulf %0, %6 : vector<16x128xf32>
    %cst_3 = arith.constant 0.166666672 : f32
    %8 = vector.broadcast %cst_3 : f32 to vector<16x128xf32>
    %9 = arith.mulf %7, %8 : vector<16x128xf32>
    %c0_4 = arith.constant 0 : index
    %c0_5 = arith.constant 0 : index
    %10 = vector.load %arg2[%c0_4, %c0_5] : memref<16x128xf32, #tpu.memory_space<vmem>>, vector<16x128xf32>
    tpu.vector_store %arg2[%c0_4, %c0_5], %9 {strides = array<i32>} : memref<16x128xf32, #tpu.memory_space<vmem>>, vector<16x128xf32>,
    return
  }
  func.func @transform_0(%arg0: i32) -> (i32, i32) {
    %c0_i32 = arith.constant 0 : i32
    %c0_i32_0 = arith.constant 0 : i32
    return %arg0, %c0_i32 : i32, i32
  }
  func.func @transform_1(%arg0: i32) -> (i32, i32) {
    %c0_i32 = arith.constant 0 : i32
    %c0_i32_0 = arith.constant 0 : i32
    return %arg0, %c0_i32 : i32, i32
  }
}

</mosaic_0001>

<llo_original>
// kernel: hswish.1
$region0: #{hswish.1}
  #allocation0 [shape = 'u32[]', space=smem, size = 0x4, offset = 0x4, fixed_abs, tag = 'smem constant byte address 0x4 - core index']
  #allocation1 [shape = 'u32[144,128]{1,0:T(1,128)}', space=vmem, size = 0x12000, scoped, tag = 'internal scratch']
  %s0 = inlined_call_operand.vmem [shape: f32[16,128], index: 0, kind: input, shape index: {}]
  %s1 = inlined_call_operand.vmem [shape: f32[16,128], index: 1, kind: output, shape index: {}]
  %s2 = sld [smem:[#allocation0]]
  $region14: #{hswish.1} parent=0
    _
  %s4 = ssub.s32 1, %s2
  %s5 = scalar_select 0, %s4, %s2
  // Predicated region
  $region2: #{hswish.1} parent=0 // pred_check
    _
  $region3: #{hswish.1} parent=0 // pred_check_branch
    %7 = sbr.rel (0) target = $region5
  $region4: #{hswish.1} parent=0 // pred_region
    _
  $region5: #{hswish.1} parent=0 // pred_fallthru
    _
  %v8 = vld [vmem:[%s0] sm:$0xff]
  %v9 = vld [vmem:[%s0 + $0x8] sm:$0xff]
  %v10 = vadd.f32 %v8, 3.0
  %v11 = vadd.f32 %v9, 3.0
  %v12 = vmax.f32 %v10, 0.0
  %v13 = vmax.f32 %v11, 0.0
  %v14 = vmin.f32 %v12, 6.0
  %v15 = vmin.f32 %v13, 6.0
  %v16 = vmul.f32 %v8, %v14
  %v17 = vmul.f32 %v9, %v15
  %v18 = vmul.f32 %v16, 0.16666667
  %v19 = vmul.f32 %v17, 0.16666667
  %20 = vst [vmem:[%s1] sm:$0xff] %v18
  %21 = vst [vmem:[%s1 + $0x8] sm:$0xff] %v19
  // Predicated region
  $region6: #{hswish.1} parent=0 // pred_check
    _
  $region7: #{hswish.1} parent=0 // pred_check_branch
    %23 = sbr.rel (0) target = $region9
  $region8: #{hswish.1} parent=0 // pred_region
    _
  $region9: #{hswish.1} parent=0 // pred_fallthru
    _
  // Predicated region
  $region10: #{hswish.1} parent=0 // pred_check
    _
  $region11: #{hswish.1} parent=0 // pred_check_branch
    %25 = sbr.rel (0) target = $region13
  $region12: #{hswish.1} parent=0 // pred_region
    _
  $region13: #{hswish.1} parent=0 // pred_fallthru
    _

</llo_original>
